<compile_context>
chip_gen: v6e
topology: v6e:2x2x1
jax: 0.10.0
libtpu: 0.0.40
codegen_flags: <defaults>
</compile_context>

<pallas_src>
import jax
import jax.numpy as jnp
from jax.experimental import pallas as pl
from jax.experimental.pallas import tpu as pltpu


def _fused_attention_kernel(q_ref, key_ref, mask_ref, val_ref, wa_ref, ba_ref,
                            score_ref, ct_ref, m_sc):
    # q_ref:     (1, 1, D)        projected query (resident per batch)
    # key_ref:   (1, S_TILE, D)   streamed ctx_key tile
    # mask_ref:  (1, N_S, S_TILE) per-batch mask (resident per batch)
    # val_ref:   (1, C, S_TILE)   streamed ctx_val tile
    # wa_ref:    (1, D)           fc_attention weight (DMA'd once)
    # ba_ref:    (1, 1) SMEM      fc_attention bias
    # score_ref: (1, N_S, S_TILE) resident out: raw logits during the loop,
    #                             normalized scores after finalize
    # ct_ref:    (1, C, 1)        resident out: ct accumulator
    # m_sc:      (1, 1) VMEM      running per-batch max of the logits
    s_idx = pl.program_id(1)

    @pl.when(s_idx == 0)
    def _init():
        m_sc[...] = jnp.full_like(m_sc, -jnp.inf)
        ct_ref[...] = jnp.zeros_like(ct_ref)

    key = key_ref[0].astype(jnp.float32)                        # (S_TILE, D)
    q = q_ref[0].astype(jnp.float32)                            # (1, D)
    pre = jnp.tanh(key + q)                                     # VPU add + EUP tanh
    # fc_attention D-contraction.  The MXU matvec also performs the sublane->lane
    # move, so the logits come out lane-dense (1, S_TILE) without a relayout (a
    # VPU+XLU reduce over D would leave them sublane-major).
    logit = jax.lax.dot_general(
        wa_ref[...].astype(jnp.float32), pre,
        (((1,), (1,)), ((), ())),
        preferred_element_type=jnp.float32) + ba_ref[0, 0]      # (1, S_TILE)

    # Stash raw logits in the per-batch resident score buffer.
    score_ref[0, pl.ds(s_idx, 1), :] = logit
    mask_t = mask_ref[0, pl.ds(s_idx, 1), :]                    # (1, S_TILE)

    # Online (running-max) accumulation of ct so ctx_val is streamed only once.
    m_prev = m_sc[...]                                          # (1, 1)
    m_new = jnp.maximum(m_prev, jnp.max(logit, axis=-1, keepdims=True))
    alpha = jnp.exp(m_prev - m_new)                             # (1, 1)
    e = jnp.exp(logit - m_new) * mask_t                         # (1, S_TILE)

    val = val_ref[0].astype(jnp.float32)                        # (C, S_TILE)
    # ct partial sum on the VPU + lane reduce (C is tiny -> no M=1 MXU matmul).
    contrib = jnp.sum(e * val, axis=-1, keepdims=True)          # (C, 1)
    ct_ref[0] = alpha * ct_ref[0] + contrib
    m_sc[...] = m_new

    @pl.when(s_idx == pl.num_programs(1) - 1)
    def _finalize():
        m = m_sc[...]                                           # (1, 1)
        e_all = jnp.exp(score_ref[0] - m) * mask_ref[0]         # (N_S, S_TILE)
        den = jnp.sum(e_all, axis=1, keepdims=True)             # (N_S, 1)
        den = jnp.sum(den, axis=0, keepdims=True) + 1e-10       # (1, 1)
        inv = pl.reciprocal(den, approx=False)
        score_ref[0] = e_all * inv                              # normalized scores
        ct_ref[0] = ct_ref[0] * inv                             # same inv as scores


def _pick_s_tile(S, requested):
    """Tile size: a multiple of 128 that (when possible) divides S=H*W so the
    big streamed arrays never need a padded HBM copy."""
    requested = max(128, (requested // 128) * 128)
    s_up = -(-S // 128) * 128                 # S rounded up to the lane width
    s_tile = min(requested, s_up)
    if S % 128 == 0:
        while S % s_tile != 0:                # terminates: 128 always divides S
            s_tile -= 128
    n_s = -(-S // s_tile)
    return s_tile, n_s, n_s * s_tile


def attention_forward(ctx_val, ctx_key, ctx_mask, ht_query, wq, wa, ba,
                      s_tile=2048):
    """ctx_val [B,C,H,W], ctx_key [B,H,W,D], ctx_mask [B,H,W], ht_query [B,n].
    wq = fc_query.weight.T [n,D] (no bias); wa = fc_attention.weight [1,D];
    ba = fc_attention.bias [1,1].  Returns (ct [B,C], attention_score [B,H,W])."""
    B, C, H, W = ctx_val.shape
    D = ctx_key.shape[-1]
    S = H * W
    f32 = jnp.float32

    s_tile, n_s, S_pad = _pick_s_tile(S, s_tile)
    pad = S_pad - S

    # Hoisted fc_query: tiny [B, n] x [n, D] GEMM, computed once.
    q3 = (ht_query.astype(f32) @ wq.astype(f32)).reshape(B, 1, D)

    # Pure views of the big arrays: no wrapper-side pad/cast HBM passes in the
    # common case; the kernel upcasts tiles to f32 on the fly.
    key3 = ctx_key.reshape(B, S, D)
    val3 = ctx_val.reshape(B, C, S)
    mask2 = ctx_mask.reshape(B, S).astype(f32)
    if pad:
        # Rare path (H*W not a multiple of 128).
        # TODO(synk): replace with an in-kernel ragged-tail mask to avoid these copies.
        key3 = jnp.pad(key3, ((0, 0), (0, pad), (0, 0)))
        val3 = jnp.pad(val3, ((0, 0), (0, 0), (0, pad)))
        mask2 = jnp.pad(mask2, ((0, 0), (0, pad)))     # zeros -> masked out
    mask3 = mask2.reshape(B, n_s, s_tile)

    wa_row = wa.reshape(1, D).astype(f32)
    ba_sc = ba.reshape(1, 1).astype(f32)

    score3, ct3 = pl.pallas_call(
        _fused_attention_kernel,
        out_shape=(jax.ShapeDtypeStruct((B, n_s, s_tile), f32),   # scores
                   jax.ShapeDtypeStruct((B, C, 1), f32)),         # ct
        grid=(B, n_s),
        in_specs=[
            pl.BlockSpec((1, 1, D), lambda b, s: (b, 0, 0)),        # q (per batch)
            pl.BlockSpec((1, s_tile, D), lambda b, s: (b, s, 0)),   # ctx_key (streamed)
            pl.BlockSpec((1, n_s, s_tile), lambda b, s: (b, 0, 0)), # mask (per batch)
            pl.BlockSpec((1, C, s_tile), lambda b, s: (b, 0, s)),   # ctx_val (streamed)
            pl.BlockSpec((1, D), lambda b, s: (0, 0)),              # wa (DMA'd once)
            pl.BlockSpec(memory_space=pltpu.MemorySpace.SMEM),      # ba scalar
        ],
        out_specs=(
            pl.BlockSpec((1, n_s, s_tile), lambda b, s: (b, 0, 0)), # resident scores
            pl.BlockSpec((1, C, 1), lambda b, s: (b, 0, 0)),        # resident ct
        ),
        scratch_shapes=[pltpu.VMEM((1, 1), f32)],                   # running max
        compiler_params=pltpu.CompilerParams(
            dimension_semantics=("parallel", "arbitrary")),
    )(q3, key3, mask3, val3, wa_row, ba_sc)

    ct = ct3[:, :, 0]                                          # [B, C]
    score = score3.reshape(B, S_pad)[:, :S].reshape(B, H, W)   # [B, H, W]
    return ct, score


def reference_forward(ctx_val, ctx_key, ctx_mask, ht_query, wq, wa, ba):
    q = ht_query @ wq                                               # [B, D]
    score = jnp.tanh(ctx_key + q[:, None, None, :])                 # [B, H, W, D]
    score = jnp.einsum('bhwd,d->bhw', score, wa[0]) + ba[0, 0]      # [B, H, W]
    score = score - score.max()
    score = jnp.exp(score) * ctx_mask
    score = score / (score.sum(axis=(1, 2))[:, None, None] + 1e-10)
    ct = (ctx_val * score[:, None, :, :]).sum(axis=(2, 3))
    return ct, score


if __name__ == "__main__":
    # Small shapes implied by the forward pass.
    B, C, H, W = 2, 4, 16, 16
    n, D = 32, 32

    key = jax.random.PRNGKey(0)
    k1, k2, k3, k4, k5, k6, k7 = jax.random.split(key, 7)

    ctx_val = jax.random.normal(k1, (B, C, H, W), dtype=jnp.float32)
    ctx_key = jax.random.normal(k2, (B, H, W, D), dtype=jnp.float32)
    ctx_mask = (jax.random.uniform(k3, (B, H, W)) > 0.3).astype(jnp.float32)
    ht_query = jax.random.normal(k4, (B, n), dtype=jnp.float32)

    # Parameters: fc_query.weight.T ([n, D], no bias), fc_attention ([1, D] + bias).
    wq = jax.random.normal(k5, (n, D), dtype=jnp.float32) * 0.1
    wa = jax.random.normal(k6, (1, D), dtype=jnp.float32) * 0.1
    ba = jax.random.normal(k7, (1, 1), dtype=jnp.float32) * 0.1

    ct, score = attention_forward(ctx_val, ctx_key, ctx_mask, ht_query, wq, wa, ba)
    jax.block_until_ready((ct, score))

    ct_ref, score_ref = reference_forward(ctx_val, ctx_key, ctx_mask, ht_query,
                                          wq, wa, ba)
    assert jnp.allclose(ct, ct_ref, atol=1e-4, rtol=1e-4), "ct mismatch"
    assert jnp.allclose(score, score_ref, atol=1e-5, rtol=1e-4), "attention_score mismatch"

    print("KERNEL_OK")
</pallas_src>

<mosaic_0001>
module attributes {stable_mosaic.version = 11 : i64} {
  func.func @_fused_attention_kernel(%arg0: i32, %arg1: i32, %arg2: memref<1x1x32xf32, #tpu.memory_space<vmem>>, %arg3: memref<1x256x32xf32, #tpu.memory_space<vmem>>, %arg4: memref<1x1x256xf32, #tpu.memory_space<vmem>>, %arg5: memref<1x4x256xf32, #tpu.memory_space<vmem>>, %arg6: memref<1x32xf32, #tpu.memory_space<vmem>>, %arg7: memref<1x1xf32, #tpu.memory_space<smem>>, %arg8: memref<1x1x256xf32, #tpu.memory_space<vmem>>, %arg9: memref<1x4x1xf32, #tpu.memory_space<vmem>>, %arg10: memref<1x1xf32, #tpu.memory_space<vmem>>) attributes {dimension_semantics = [#tpu.dimension_semantics<parallel>, #tpu.dimension_semantics<arbitrary>], iteration_bounds = array<i64: 2, 1>, scalar_prefetch = 0 : i64, scratch_operands = 1 : i64, tpu.core_type = #tpu.core_type<tc>, window_params = [{transform_indices = @transform_0, window_bounds = array<i64: 1, 1, 32>}, {transform_indices = @transform_1, window_bounds = array<i64: 1, 256, 32>}, {transform_indices = @transform_2, window_bounds = array<i64: 1, 1, 256>}, {transform_indices = @transform_3, window_bounds = array<i64: 1, 4, 256>}, {pipeline_mode = #tpu.pipeline_mode<synchronous>, transform_indices = @transform_4, window_bounds = array<i64: 1, 32>}, {transform_indices = @transform_5, window_bounds = array<i64: 1, 1>}, {transform_indices = @transform_6, window_bounds = array<i64: 1, 1, 256>}, {transform_indices = @transform_7, window_bounds = array<i64: 1, 4, 1>}]} {
    %c0_i32 = arith.constant 0 : i32
    %0 = arith.cmpi eq, %arg1, %c0_i32 : i32
    %1 = arith.extui %0 : i1 to i32
    %c0_i32_0 = arith.constant 0 : i32
    %2 = arith.cmpi ne, %1, %c0_i32_0 : i32
    scf.if %2 {
      %cst_31 = arith.constant 0xFF800000 : f32
      %50 = vector.broadcast %cst_31 : f32 to vector<1x1xf32>
      %c0_32 = arith.constant 0 : index
      %c0_33 = arith.constant 0 : index
      %51 = vector.load %arg10[%c0_32, %c0_33] : memref<1x1xf32, #tpu.memory_space<vmem>>, vector<1x1xf32>
      tpu.vector_store %arg10[%c0_32, %c0_33], %50 {strides = array<i32>} : memref<1x1xf32, #tpu.memory_space<vmem>>, vector<1x1xf32>,
      %cst_34 = arith.constant 0.000000e+00 : f32
      %52 = vector.broadcast %cst_34 : f32 to vector<1x4x1xf32>
      %c0_35 = arith.constant 0 : index
      %c0_36 = arith.constant 0 : index
      %c0_37 = arith.constant 0 : index
      %53 = vector.load %arg9[%c0_35, %c0_36, %c0_37] : memref<1x4x1xf32, #tpu.memory_space<vmem>>, vector<1x4x1xf32>
      tpu.vector_store %arg9[%c0_35, %c0_36, %c0_37], %52 {strides = array<i32>} : memref<1x4x1xf32, #tpu.memory_space<vmem>>, vector<1x4x1xf32>,
    } else {
    }
    %c0 = arith.constant 0 : index
    %c0_1 = arith.constant 0 : index
    %c0_2 = arith.constant 0 : index
    %3 = vector.load %arg3[%c0, %c0_1, %c0_2] : memref<1x256x32xf32, #tpu.memory_space<vmem>>, vector<1x256x32xf32>
    %4 = vector.shape_cast %3 : vector<1x256x32xf32> to vector<256x32xf32>
    %c0_3 = arith.constant 0 : index
    %c0_4 = arith.constant 0 : index
    %c0_5 = arith.constant 0 : index
    %5 = vector.load %arg2[%c0_3, %c0_4, %c0_5] : memref<1x1x32xf32, #tpu.memory_space<vmem>>, vector<1x1x32xf32>
    %6 = vector.shape_cast %5 : vector<1x1x32xf32> to vector<1x32xf32>
    %7 = vector.broadcast %6 : vector<1x32xf32> to vector<256x32xf32>
    %8 = arith.addf %4, %7 : vector<256x32xf32>
    %9 = math.tanh %8 : vector<256x32xf32>
    %c0_6 = arith.constant 0 : index
    %c0_7 = arith.constant 0 : index
    %10 = vector.load %arg6[%c0_6, %c0_7] : memref<1x32xf32, #tpu.memory_space<vmem>>, vector<1x32xf32>
    %cst = arith.constant dense<0.000000e+00> : vector<1x256xf32>
    %11 = tpu.matmul %10, %9, %cst {dimension_numbers = #tpu.dot_dimension_numbers<[1], [1], [0], [0], [0, 0, 1, 0], [], []>} : vector<1x32xf32>, vector<256x32xf32>, vector<1x256xf32> -> vector<1x256xf32>
    %c0_8 = arith.constant 0 : index
    %c0_9 = arith.constant 0 : index
    %12 = memref.load %arg7[%c0_8, %c0_9] : memref<1x1xf32, #tpu.memory_space<smem>>
    %13 = vector.broadcast %12 : f32 to vector<1x256xf32>
    %14 = arith.addf %11, %13 : vector<1x256xf32>
    %c0_10 = arith.constant 0 : index
    %15 = arith.index_cast %arg1 : i32 to index
    %c0_11 = arith.constant 0 : index
    %16 = vector.load %arg8[%c0_10, %15, %c0_11] : memref<1x1x256xf32, #tpu.memory_space<vmem>>, vector<1x1x256xf32>
    %17 = vector.shape_cast %16 : vector<1x1x256xf32> to vector<1x256xf32>
    %18 = vector.shape_cast %14 : vector<1x256xf32> to vector<1x1x256xf32>
    tpu.vector_store %arg8[%c0_10, %15, %c0_11], %18 {strides = array<i32>} : memref<1x1x256xf32, #tpu.memory_space<vmem>>, vector<1x1x256xf32>,
    %c0_12 = arith.constant 0 : index
    %19 = arith.index_cast %arg1 : i32 to index
    %c0_13 = arith.constant 0 : index
    %20 = vector.load %arg4[%c0_12, %19, %c0_13] : memref<1x1x256xf32, #tpu.memory_space<vmem>>, vector<1x1x256xf32>
    %21 = vector.shape_cast %20 : vector<1x1x256xf32> to vector<1x256xf32>
    %c0_14 = arith.constant 0 : index
    %c0_15 = arith.constant 0 : index
    %22 = vector.load %arg10[%c0_14, %c0_15] : memref<1x1xf32, #tpu.memory_space<vmem>>, vector<1x1xf32>
    %cst_16 = arith.constant dense<0xFF800000> : vector<1xf32>
    %23 = vector.multi_reduction <maximumf>, %14, %cst_16 [1] : vector<1x256xf32> to vector<1xf32>
    %24 = vector.shape_cast %23 : vector<1xf32> to vector<1x1xf32>
    %25 = arith.maximumf %22, %24 : vector<1x1xf32>
    %26 = arith.subf %22, %25 : vector<1x1xf32>
    %27 = math.exp %26 : vector<1x1xf32>
    %28 = vector.broadcast %25 : vector<1x1xf32> to vector<1x256xf32>
    %29 = arith.subf %14, %28 : vector<1x256xf32>
    %30 = math.exp %29 : vector<1x256xf32>
    %31 = arith.mulf %30, %21 : vector<1x256xf32>
    %c0_17 = arith.constant 0 : index
    %c0_18 = arith.constant 0 : index
    %c0_19 = arith.constant 0 : index
    %32 = vector.load %arg5[%c0_17, %c0_18, %c0_19] : memref<1x4x256xf32, #tpu.memory_space<vmem>>, vector<1x4x256xf32>
    %33 = vector.shape_cast %32 : vector<1x4x256xf32> to vector<4x256xf32>
    %34 = vector.broadcast %31 : vector<1x256xf32> to vector<4x256xf32>
    %35 = arith.mulf %34, %33 : vector<4x256xf32>
    %cst_20 = arith.constant dense<0.000000e+00> : vector<4xf32>
    %36 = vector.multi_reduction <add>, %35, %cst_20 [1] : vector<4x256xf32> to vector<4xf32>
    %37 = vector.shape_cast %36 : vector<4xf32> to vector<4x1xf32>
    %c0_21 = arith.constant 0 : index
    %c0_22 = arith.constant 0 : index
    %c0_23 = arith.constant 0 : index
    %38 = vector.load %arg9[%c0_21, %c0_22, %c0_23] : memref<1x4x1xf32, #tpu.memory_space<vmem>>, vector<1x4x1xf32>
    %39 = vector.shape_cast %38 : vector<1x4x1xf32> to vector<4x1xf32>
    %40 = vector.broadcast %27 : vector<1x1xf32> to vector<4x1xf32>
    %41 = arith.mulf %40, %39 : vector<4x1xf32>
    %42 = arith.addf %41, %37 : vector<4x1xf32>
    %c0_24 = arith.constant 0 : index
    %c0_25 = arith.constant 0 : index
    %c0_26 = arith.constant 0 : index
    %43 = vector.load %arg9[%c0_24, %c0_25, %c0_26] : memref<1x4x1xf32, #tpu.memory_space<vmem>>, vector<1x4x1xf32>
    %44 = vector.shape_cast %43 : vector<1x4x1xf32> to vector<4x1xf32>
    %45 = vector.shape_cast %42 : vector<4x1xf32> to vector<1x4x1xf32>
    tpu.vector_store %arg9[%c0_24, %c0_25, %c0_26], %45 {strides = array<i32>} : memref<1x4x1xf32, #tpu.memory_space<vmem>>, vector<1x4x1xf32>,
    %c0_27 = arith.constant 0 : index
    %c0_28 = arith.constant 0 : index
    %46 = vector.load %arg10[%c0_27, %c0_28] : memref<1x1xf32, #tpu.memory_space<vmem>>, vector<1x1xf32>
    tpu.vector_store %arg10[%c0_27, %c0_28], %25 {strides = array<i32>} : memref<1x1xf32, #tpu.memory_space<vmem>>, vector<1x1xf32>,
    %c0_i32_29 = arith.constant 0 : i32
    %47 = arith.cmpi eq, %arg1, %c0_i32_29 : i32
    %48 = arith.extui %47 : i1 to i32
    %c0_i32_30 = arith.constant 0 : i32
    %49 = arith.cmpi ne, %48, %c0_i32_30 : i32
    scf.if %49 {
      %c0_31 = arith.constant 0 : index
      %c0_32 = arith.constant 0 : index
      %50 = vector.load %arg10[%c0_31, %c0_32] : memref<1x1xf32, #tpu.memory_space<vmem>>, vector<1x1xf32>
      %c0_33 = arith.constant 0 : index
      %c0_34 = arith.constant 0 : index
      %c0_35 = arith.constant 0 : index
      %51 = vector.load %arg8[%c0_33, %c0_34, %c0_35] : memref<1x1x256xf32, #tpu.memory_space<vmem>>, vector<1x1x256xf32>
      %52 = vector.shape_cast %51 : vector<1x1x256xf32> to vector<1x256xf32>
      %53 = vector.broadcast %50 : vector<1x1xf32> to vector<1x256xf32>
      %54 = arith.subf %52, %53 : vector<1x256xf32>
      %55 = math.exp %54 : vector<1x256xf32>
      %c0_36 = arith.constant 0 : index
      %c0_37 = arith.constant 0 : index
      %c0_38 = arith.constant 0 : index
      %56 = vector.load %arg4[%c0_36, %c0_37, %c0_38] : memref<1x1x256xf32, #tpu.memory_space<vmem>>, vector<1x1x256xf32>
      %57 = vector.shape_cast %56 : vector<1x1x256xf32> to vector<1x256xf32>
      %58 = arith.mulf %55, %57 : vector<1x256xf32>
      %cst_39 = arith.constant dense<0.000000e+00> : vector<1xf32>
      %59 = vector.multi_reduction <add>, %58, %cst_39 [1] : vector<1x256xf32> to vector<1xf32>
      %60 = vector.shape_cast %59 : vector<1xf32> to vector<1x1xf32>
      %cst_40 = arith.constant dense<0.000000e+00> : vector<1xf32>
      %61 = vector.multi_reduction <add>, %60, %cst_40 [0] : vector<1x1xf32> to vector<1xf32>
      %62 = vector.shape_cast %61 : vector<1xf32> to vector<1x1xf32>
      %cst_41 = arith.constant 1.000000e-10 : f32
      %63 = vector.broadcast %cst_41 : f32 to vector<1x1xf32>
      %64 = arith.addf %62, %63 : vector<1x1xf32>
      %65 = tpu.reciprocal %64 : vector<1x1xf32> -> vector<1x1xf32>
      %66 = vector.broadcast %65 : vector<1x1xf32> to vector<1x256xf32>
      %67 = arith.mulf %58, %66 : vector<1x256xf32>
      %c0_42 = arith.constant 0 : index
      %c0_43 = arith.constant 0 : index
      %c0_44 = arith.constant 0 : index
      %68 = vector.load %arg8[%c0_42, %c0_43, %c0_44] : memref<1x1x256xf32, #tpu.memory_space<vmem>>, vector<1x1x256xf32>
      %69 = vector.shape_cast %68 : vector<1x1x256xf32> to vector<1x256xf32>
      %70 = vector.shape_cast %67 : vector<1x256xf32> to vector<1x1x256xf32>
      tpu.vector_store %arg8[%c0_42, %c0_43, %c0_44], %70 {strides = array<i32>} : memref<1x1x256xf32, #tpu.memory_space<vmem>>, vector<1x1x256xf32>,
      %c0_45 = arith.constant 0 : index
      %c0_46 = arith.constant 0 : index
      %c0_47 = arith.constant 0 : index
      %71 = vector.load %arg9[%c0_45, %c0_46, %c0_47] : memref<1x4x1xf32, #tpu.memory_space<vmem>>, vector<1x4x1xf32>
      %72 = vector.shape_cast %71 : vector<1x4x1xf32> to vector<4x1xf32>
      %73 = vector.broadcast %65 : vector<1x1xf32> to vector<4x1xf32>
      %74 = arith.mulf %72, %73 : vector<4x1xf32>
      %c0_48 = arith.constant 0 : index
      %c0_49 = arith.constant 0 : index
      %c0_50 = arith.constant 0 : index
      %75 = vector.load %arg9[%c0_48, %c0_49, %c0_50] : memref<1x4x1xf32, #tpu.memory_space<vmem>>, vector<1x4x1xf32>
      %76 = vector.shape_cast %75 : vector<1x4x1xf32> to vector<4x1xf32>
      %77 = vector.shape_cast %74 : vector<4x1xf32> to vector<1x4x1xf32>
      tpu.vector_store %arg9[%c0_48, %c0_49, %c0_50], %77 {strides = array<i32>} : memref<1x4x1xf32, #tpu.memory_space<vmem>>, vector<1x4x1xf32>,
    } else {
    }
    return
  }
  func.func @transform_0(%arg0: i32, %arg1: i32) -> (i32, i32, i32) {
    %c0_i32 = arith.constant 0 : i32
    %c0_i32_0 = arith.constant 0 : i32
    %c0_i32_1 = arith.constant 0 : i32
    return %arg0, %c0_i32, %c0_i32_0 : i32, i32, i32
  }
  func.func @transform_1(%arg0: i32, %arg1: i32) -> (i32, i32, i32) {
    %c0_i32 = arith.constant 0 : i32
    %c0_i32_0 = arith.constant 0 : i32
    return %arg0, %arg1, %c0_i32 : i32, i32, i32
  }
  func.func @transform_2(%arg0: i32, %arg1: i32) -> (i32, i32, i32) {
    %c0_i32 = arith.constant 0 : i32
    %c0_i32_0 = arith.constant 0 : i32
    %c0_i32_1 = arith.constant 0 : i32
    return %arg0, %c0_i32, %c0_i32_0 : i32, i32, i32
  }
  func.func @transform_3(%arg0: i32, %arg1: i32) -> (i32, i32, i32) {
    %c0_i32 = arith.constant 0 : i32
    %c0_i32_0 = arith.constant 0 : i32
    return %arg0, %c0_i32, %arg1 : i32, i32, i32
  }
  func.func @transform_4(%arg0: i32, %arg1: i32) -> (i32, i32) {
    %c0_i32 = arith.constant 0 : i32
    %c0_i32_0 = arith.constant 0 : i32
    %c0_i32_1 = arith.constant 0 : i32
    return %c0_i32, %c0_i32_0 : i32, i32
  }
  func.func @transform_5(%arg0: i32, %arg1: i32) -> (i32, i32) {
    %c0_i32 = arith.constant 0 : i32
    %c0_i32_0 = arith.constant 0 : i32
    %c0_i32_1 = arith.constant 0 : i32
    return %c0_i32, %c0_i32_0 : i32, i32
  }
  func.func @transform_6(%arg0: i32, %arg1: i32) -> (i32, i32, i32) {
    %c0_i32 = arith.constant 0 : i32
    %c0_i32_0 = arith.constant 0 : i32
    %c0_i32_1 = arith.constant 0 : i32
    return %arg0, %c0_i32, %c0_i32_0 : i32, i32, i32
  }
  func.func @transform_7(%arg0: i32, %arg1: i32) -> (i32, i32, i32) {
    %c0_i32 = arith.constant 0 : i32
    %c0_i32_0 = arith.constant 0 : i32
    %c0_i32_1 = arith.constant 0 : i32
    return %arg0, %c0_i32, %c0_i32_0 : i32, i32, i32
  }
}

</mosaic_0001>

<llo_original>
// kernel: tpu_custom_call.1
$region0: #{tpu_custom_call.1}
  #allocation0 [shape = 'u32[]', space=smem, size = 0x4, offset = 0x4, fixed_abs, tag = 'smem constant byte address 0x4 - core index']
  #allocation1 [shape = 'u32[144,128]{1,0:T(1,128)}', space=vmem, size = 0x12000, scoped, tag = 'internal scratch']
  #allocation2 [shape = 'f32[1,1]{1,0:T(1,128)}', space=vmem, size = 0x200, scoped, tag = 'scratch operand']
  #allocation3 [shape = 'f32[1,1]{1,0:T(1,128)S(6)}', space=smem, size = 0x200, scoped, tag = 'scoped memory for tpu_custom_call.1']
  %s0 = inlined_call_operand.vmem [shape: f32[2,1,32], index: 0, kind: input, shape index: {}]
  %s1 = inlined_call_operand.vmem [shape: f32[2,256,32], index: 1, kind: input, shape index: {}]
  %s2 = inlined_call_operand.vmem [shape: f32[2,1,256], index: 2, kind: input, shape index: {}]
  %s3 = inlined_call_operand.vmem [shape: f32[2,4,256], index: 3, kind: input, shape index: {}]
  %s4 = inlined_call_operand.vmem [shape: f32[1,32], index: 4, kind: input, shape index: {}]
  %s5 = inlined_call_operand.<no memory space> [shape: f32[1,1], index: 5, kind: input, shape index: {}]
  %s6 = inlined_call_operand.hbm [shape: f32[2,1,256], index: 6, kind: output, shape index: {0}]
  %s7 = inlined_call_operand.vmem [shape: f32[2,4,1], index: 7, kind: output, shape index: {1}]
  %8 = xla_tuple %s6, %s7
  %s9 = sld [smem:[#allocation0]]
  $region73: #{tpu_custom_call.1} parent=0
    _
  %s11 = ssub.s32 1, %s9
  %s12 = scalar_select 0, %s11, %s9
  %13 = sst [smem:[#allocation3]] %s5
  $region1: #{tpu_custom_call.1} parent=0
    #allocation4 [shape = 'u8[2048]{0}', space=vmem, size = 0x800, scoped, tag = 'output window, operand 0']
    #allocation5 [shape = 's32[2]{0}', space=sflag, size = 0x8, scoped, tag = 'scoped memory for tpu_custom_call.1']
    %14 = vsyncpa [#allocation5], 0
    %s15 = scalar_lea.sflag [#allocation5], 1
    %16 = vsyncpa %s15, 0
    loop: start=0, step=1, limit=4
    $region2: #{tpu_custom_call.1} parent=1 // loop_pre_header
      _
    $region3: #{tpu_custom_call.1} parent=1 // loop_header
      %s18 = sphi 0, %s22
      %p19 = scmp.ge.s32.totalorder %s18, 4
      %s25 = sphi 0, %s37
      %s26 = sphi 0, %s33
      %s27 = sphi 0, %s25
      %s28 = sphi 0, %s26
      %s29 = sphi 0, %s27
      %s30 = sphi 0, %s28
      %s40 = sphi 0, %s42
      %s43 = sphi 0, %s40
      %s44 = sphi 0, %s43
      %s60 = sphi 0, %s44
      %s68 = sphi 0, %s70
      %s71 = sphi 0, %s68
      %s72 = sphi 0, %s71
      %s88 = sphi 0, %s72
      %s94 = sphi 0, %s96
      %s97 = sphi 0, %s94
      %s98 = sphi 0, %s97
      %s114 = sphi 0, %s98
      %s122 = sphi 0, %s124
      %s125 = sphi 0, %s122
      %s126 = sphi 0, %s125
      %s142 = sphi 0, %s126
      %s146 = sphi 0, %s146
      %s148 = sphi 0, %s146
      %s149 = sphi 0, %s148
      %s163 = sphi 0, %s149
      %s167 = sphi 0, %s167
      %s169 = sphi 0, %s167
      %s170 = sphi 0, %s169
      %s184 = sphi 0, %s170
      %s190 = sphi 0, %s192
      %s193 = sphi 0, %s190
      %s194 = sphi 0, %s193
      %s210 = sphi 0, %s194
      %s216 = sphi 0, %s218
      %s219 = sphi 0, %s216
      %s220 = sphi 0, %s219
      %s236 = sphi 0, %s220
    $region4: #{tpu_custom_call.1} parent=1 // loop_header_branch
      %21 = sbr.rel (%p19) target = $region8
    $region5: #{tpu_custom_call.1} parent=1 // loop_body
      %s23 = ssub.s32 %s18, 1
      %s24 = ssub.s32 %s18, 2
      %s31 = sadd.s32 1, %s26
      %p32 = scmp.ge.s32.totalorder %s31, 1
      %s33 = scalar_select %p32, 0, %s31
      %s34 = sadd.s32 1, %s25
      %s35 = scalar_select %p32, %s34, %s25
      %p36 = scmp.ge.s32.totalorder %s35, 2
      %s37 = scalar_select %p36, 0, %s35
      %s38 = ssub.s32 %s25, %s37
      %p39 = scmp.eq.s32.totalorder %s38, 0
      %s41 = sadd.s32 %s40, 1
      %s42 = scalar_select %p39, %s40, %s41
      %p45 = pneg %p39
      %p46 = scmp.eq.s32.totalorder %s18, 1
      %p47 = por %p45, %p46
      %p48 = scmp.ne.s32.totalorder %s40, %s43
      %p49 = scmp.eq.s32.totalorder %s18, 0
      %p50 = por %p48, %p49
      %p51 = scmp.ne.s32.totalorder %s40, %s43
      %p52 = scmp.eq.s32.totalorder %s23, 1
      %p53 = por %p51, %p52
      %p54 = scmp.ne.s32.totalorder %s43, %s44
      %p55 = scmp.eq.s32.totalorder %s23, 0
      %p56 = por %p54, %p55
      %p57 = scmp.ne.s32.totalorder %s43, %s44
      %p58 = scmp.eq.s32.totalorder %s24, 1
      %p59 = por %p57, %p58
      %p61 = scmp.ne.s32.totalorder %s44, %s60
      %p62 = scmp.eq.s32.totalorder %s24, 0
      %p63 = por %p61, %p62
      %s64 = ssub.s32 %s25, %s37
      %s65 = ssub.s32 %s26, %s33
      %s66 = sor.u32 %s64, %s65
      %p67 = scmp.eq.s32.totalorder %s66, 0
      %s69 = sadd.s32 %s68, 1
      %s70 = scalar_select %p67, %s68, %s69
      %p73 = pneg %p67
      %p74 = scmp.eq.s32.totalorder %s18, 1
      %p75 = por %p73, %p74
      %p76 = scmp.ne.s32.totalorder %s68, %s71
      %p77 = scmp.eq.s32.totalorder %s18, 0
      %p78 = por %p76, %p77
      %p79 = scmp.ne.s32.totalorder %s68, %s71
      %p80 = scmp.eq.s32.totalorder %s23, 1
      %p81 = por %p79, %p80
      %p82 = scmp.ne.s32.totalorder %s71, %s72
      %p83 = scmp.eq.s32.totalorder %s23, 0
      %p84 = por %p82, %p83
      %p85 = scmp.ne.s32.totalorder %s71, %s72
      %p86 = scmp.eq.s32.totalorder %s24, 1
      %p87 = por %p85, %p86
      %p89 = scmp.ne.s32.totalorder %s72, %s88
      %p90 = scmp.eq.s32.totalorder %s24, 0
      %p91 = por %p89, %p90
      %s92 = ssub.s32 %s25, %s37
      %p93 = scmp.eq.s32.totalorder %s92, 0
      %s95 = sadd.s32 %s94, 1
      %s96 = scalar_select %p93, %s94, %s95
      %p99 = pneg %p93
      %p100 = scmp.eq.s32.totalorder %s18, 1
      %p101 = por %p99, %p100
      %p102 = scmp.ne.s32.totalorder %s94, %s97
      %p103 = scmp.eq.s32.totalorder %s18, 0
      %p104 = por %p102, %p103
      %p105 = scmp.ne.s32.totalorder %s94, %s97
      %p106 = scmp.eq.s32.totalorder %s23, 1
      %p107 = por %p105, %p106
      %p108 = scmp.ne.s32.totalorder %s97, %s98
      %p109 = scmp.eq.s32.totalorder %s23, 0
      %p110 = por %p108, %p109
      %p111 = scmp.ne.s32.totalorder %s97, %s98
      %p112 = scmp.eq.s32.totalorder %s24, 1
      %p113 = por %p111, %p112
      %p115 = scmp.ne.s32.totalorder %s98, %s114
      %p116 = scmp.eq.s32.totalorder %s24, 0
      %p117 = por %p115, %p116
      %s118 = ssub.s32 %s25, %s37
      %s119 = ssub.s32 %s26, %s33
      %s120 = sor.u32 %s118, %s119
      %p121 = scmp.eq.s32.totalorder %s120, 0
      %s123 = sadd.s32 %s122, 1
      %s124 = scalar_select %p121, %s122, %s123
      %p127 = pneg %p121
      %p128 = scmp.eq.s32.totalorder %s18, 1
      %p129 = por %p127, %p128
      %p130 = scmp.ne.s32.totalorder %s122, %s125
      %p131 = scmp.eq.s32.totalorder %s18, 0
      %p132 = por %p130, %p131
      %p133 = scmp.ne.s32.totalorder %s122, %s125
      %p134 = scmp.eq.s32.totalorder %s23, 1
      %p135 = por %p133, %p134
      %p136 = scmp.ne.s32.totalorder %s125, %s126
      %p137 = scmp.eq.s32.totalorder %s23, 0
      %p138 = por %p136, %p137
      %p139 = scmp.ne.s32.totalorder %s125, %s126
      %p140 = scmp.eq.s32.totalorder %s24, 1
      %p141 = por %p139, %p140
      %p143 = scmp.ne.s32.totalorder %s126, %s142
      %p144 = scmp.eq.s32.totalorder %s24, 0
      %p145 = por %p143, %p144
      %s147 = sadd.s32 %s146, 1
      %p150 = scmp.eq.s32.totalorder %s18, 1
      %p151 = scmp.ne.s32.totalorder %s146, %s148
      %p152 = scmp.eq.s32.totalorder %s18, 0
      %p153 = por %p151, %p152
      %p154 = scmp.ne.s32.totalorder %s146, %s148
      %p155 = scmp.eq.s32.totalorder %s23, 1
      %p156 = por %p154, %p155
      %p157 = scmp.ne.s32.totalorder %s148, %s149
      %p158 = scmp.eq.s32.totalorder %s23, 0
      %p159 = por %p157, %p158
      %p160 = scmp.ne.s32.totalorder %s148, %s149
      %p161 = scmp.eq.s32.totalorder %s24, 1
      %p162 = por %p160, %p161
      %p164 = scmp.ne.s32.totalorder %s149, %s163
      %p165 = scmp.eq.s32.totalorder %s24, 0
      %p166 = por %p164, %p165
      %s168 = sadd.s32 %s167, 1
      %p171 = scmp.eq.s32.totalorder %s18, 1
      %p172 = scmp.ne.s32.totalorder %s167, %s169
      %p173 = scmp.eq.s32.totalorder %s18, 0
      %p174 = por %p172, %p173
      %p175 = scmp.ne.s32.totalorder %s167, %s169
      %p176 = scmp.eq.s32.totalorder %s23, 1
      %p177 = por %p175, %p176
      %p178 = scmp.ne.s32.totalorder %s169, %s170
      %p179 = scmp.eq.s32.totalorder %s23, 0
      %p180 = por %p178, %p179
      %p181 = scmp.ne.s32.totalorder %s169, %s170
      %p182 = scmp.eq.s32.totalorder %s24, 1
      %p183 = por %p181, %p182
      %p185 = scmp.ne.s32.totalorder %s170, %s184
      %p186 = scmp.eq.s32.totalorder %s24, 0
      %p187 = por %p185, %p186
      %s188 = ssub.s32 %s25, %s37
      %p189 = scmp.eq.s32.totalorder %s188, 0
      %s191 = sadd.s32 %s190, 1
      %s192 = scalar_select %p189, %s190, %s191
      %p195 = pneg %p189
      %p196 = scmp.eq.s32.totalorder %s18, 1
      %p197 = por %p195, %p196
      %p198 = scmp.ne.s32.totalorder %s190, %s193
      %p199 = scmp.eq.s32.totalorder %s18, 0
      %p200 = por %p198, %p199
      %p201 = scmp.ne.s32.totalorder %s190, %s193
      %p202 = scmp.eq.s32.totalorder %s23, 1
      %p203 = por %p201, %p202
      %p204 = scmp.ne.s32.totalorder %s193, %s194
      %p205 = scmp.eq.s32.totalorder %s23, 0
      %p206 = por %p204, %p205
      %p207 = scmp.ne.s32.totalorder %s193, %s194
      %p208 = scmp.eq.s32.totalorder %s24, 1
      %p209 = por %p207, %p208
      %p211 = scmp.ne.s32.totalorder %s194, %s210
      %p212 = scmp.eq.s32.totalorder %s24, 0
      %p213 = por %p211, %p212
      %s214 = ssub.s32 %s25, %s37
      %p215 = scmp.eq.s32.totalorder %s214, 0
      %s217 = sadd.s32 %s216, 1
      %s218 = scalar_select %p215, %s216, %s217
      %p221 = pneg %p215
      %p222 = scmp.eq.s32.totalorder %s18, 1
      %p223 = por %p221, %p222
      %p224 = scmp.ne.s32.totalorder %s216, %s219
      %p225 = scmp.eq.s32.totalorder %s18, 0
      %p226 = por %p224, %p225
      %p227 = scmp.ne.s32.totalorder %s216, %s219
      %p228 = scmp.eq.s32.totalorder %s23, 1
      %p229 = por %p227, %p228
      %p230 = scmp.ne.s32.totalorder %s219, %s220
      %p231 = scmp.eq.s32.totalorder %s23, 0
      %p232 = por %p230, %p231
      %p233 = scmp.ne.s32.totalorder %s219, %s220
      %p234 = scmp.eq.s32.totalorder %s24, 1
      %p235 = por %p233, %p234
      %p237 = scmp.ne.s32.totalorder %s220, %s236
      %p238 = scmp.eq.s32.totalorder %s24, 0
      %p239 = por %p237, %p238
      %p240 = scmp.le.s32.totalorder 1, %s18
      %p241 = scmp.lt.s32.totalorder %s18, 3
      %p242 = pnand %p240, %p241
      %p243 = pneg %p242
      // Predicated region
      $region9: #{tpu_custom_call.1} parent=5 // pred_check
        _
      $region10: #{tpu_custom_call.1} parent=5 // pred_check_branch
        %245 = sbr.rel (%p242) target = $region12
      $region11: #{tpu_custom_call.1} parent=5 // pred_region
        %s246 = ssub.s32 %s18, 1
        // Predicated region
        $region13: #{tpu_custom_call.1} parent=11 // pred_check
          %p247 = pneg %p159
        $region14: #{tpu_custom_call.1} parent=11 // pred_check_branch
          %249 = sbr.rel (%p247) target = $region16
        $region15: #{tpu_custom_call.1} parent=11 // pred_region
          _
        $region16: #{tpu_custom_call.1} parent=11 // pred_fallthru
          _
        // Predicated region
        $region17: #{tpu_custom_call.1} parent=11 // pred_check
          %p250 = pneg %p180
        $region18: #{tpu_custom_call.1} parent=11 // pred_check_branch
          %252 = sbr.rel (%p250) target = $region20
        $region19: #{tpu_custom_call.1} parent=11 // pred_region
          _
        $region20: #{tpu_custom_call.1} parent=11 // pred_fallthru
          _
      $region12: #{tpu_custom_call.1} parent=5 // pred_fallthru
        _
      %p253 = scmp.lt.s32.totalorder %s18, 2
      // Predicated region
      $region21: #{tpu_custom_call.1} parent=5 // pred_check
        %p254 = pneg %p253
      $region22: #{tpu_custom_call.1} parent=5 // pred_check_branch
        %256 = sbr.rel (%p254) target = $region24
      $region23: #{tpu_custom_call.1} parent=5 // pred_region
        // Predicated region
        $region25: #{tpu_custom_call.1} parent=23 // pred_check
          %p257 = pneg %p50
        $region26: #{tpu_custom_call.1} parent=23 // pred_check_branch
          %259 = sbr.rel (%p257) target = $region28
        $region27: #{tpu_custom_call.1} parent=23 // pred_region
          %p260 = scmp.lt.s32.totalorder %s25, 1
          %s261 = scalar_select %p260, %s25, 1
          %s262 = scalar_lea.vmem %s0, %s261
        $region28: #{tpu_custom_call.1} parent=23 // pred_fallthru
          _
        // Predicated region
        $region29: #{tpu_custom_call.1} parent=23 // pred_check
          %p263 = pneg %p78
        $region30: #{tpu_custom_call.1} parent=23 // pred_check_branch
          %265 = sbr.rel (%p263) target = $region32
        $region31: #{tpu_custom_call.1} parent=23 // pred_region
          %s266 = smul.u32 32, %s26
          %p267 = scmp.lt.s32.totalorder %s25, 1
          %s268 = scalar_select %p267, %s25, 1
          %p269 = scmp.lt.s32.totalorder %s266, 31
          %s270 = scalar_select %p269, %s266, 31
          %s271 = smul.addr %s268, 32
          %s272 = sadd.s32 %s270, %s271
          %s273 = smul.addr %s272, 8
          %s274 = scalar_lea.vmem %s1, %s273
          %s275 = smul.u32 32, %s26
        $region32: #{tpu_custom_call.1} parent=23 // pred_fallthru
          _
        // Predicated region
        $region33: #{tpu_custom_call.1} parent=23 // pred_check
          %p276 = pneg %p104
        $region34: #{tpu_custom_call.1} parent=23 // pred_check_branch
          %278 = sbr.rel (%p276) target = $region36
        $region35: #{tpu_custom_call.1} parent=23 // pred_region
          %p279 = scmp.lt.s32.totalorder %s25, 1
          %s280 = scalar_select %p279, %s25, 1
          %s281 = smul.addr %s280, 2
          %s282 = scalar_lea.vmem %s2, %s281
        $region36: #{tpu_custom_call.1} parent=23 // pred_fallthru
          _
        // Predicated region
        $region37: #{tpu_custom_call.1} parent=23 // pred_check
          %p283 = pneg %p132
        $region38: #{tpu_custom_call.1} parent=23 // pred_check_branch
          %285 = sbr.rel (%p283) target = $region40
        $region39: #{tpu_custom_call.1} parent=23 // pred_region
          %s286 = smul.u32 2, %s26
          %p287 = scmp.lt.s32.totalorder %s25, 1
          %s288 = scalar_select %p287, %s25, 1
          %p289 = scmp.lt.s32.totalorder %s286, 1
          %s290 = scalar_select %p289, %s286, 1
          %s291 = smul.addr %s288, 2
          %s292 = sadd.s32 %s290, %s291
          %s293 = smul.addr %s292, 4
          %s294 = scalar_lea.vmem %s3, %s293
          %s295 = smul.u32 2, %s26
        $region40: #{tpu_custom_call.1} parent=23 // pred_fallthru
          _
      $region24: #{tpu_custom_call.1} parent=5 // pred_fallthru
        _
      %p296 = scmp.le.s32.totalorder 1, %s18
      %p297 = scmp.lt.s32.totalorder %s18, 3
      %p298 = pnand %p296, %p297
      %p299 = pneg %p298
      // Predicated region
      $region41: #{tpu_custom_call.1} parent=5 // pred_check
        _
      $region42: #{tpu_custom_call.1} parent=5 // pred_check_branch
        %301 = sbr.rel (%p298) target = $region44
      $region43: #{tpu_custom_call.1} parent=5 // pred_region
        %s302 = ssub.s32 %s18, 1
        %p303 = scmp.lt.s32.totalorder %s27, 1
        %s304 = scalar_select %p303, %s27, 1
        %s305 = scalar_lea.vmem %s0, %s304
        %p306 = pneg %p56
        %p307 = pneg %p53
        %s308 = smul.u32 32, %s28
        %p309 = scmp.lt.s32.totalorder %s27, 1
        %s310 = scalar_select %p309, %s27, 1
        %p311 = scmp.lt.s32.totalorder %s308, 31
        %s312 = scalar_select %p311, %s308, 31
        %s313 = smul.addr %s310, 32
        %s314 = sadd.s32 %s312, %s313
        %s315 = smul.addr %s314, 8
        %s316 = scalar_lea.vmem %s1, %s315
        %p317 = pneg %p84
        %p318 = pneg %p81
        %p319 = scmp.lt.s32.totalorder %s27, 1
        %s320 = scalar_select %p319, %s27, 1
        %s321 = smul.addr %s320, 2
        %s322 = scalar_lea.vmem %s2, %s321
        %p323 = pneg %p110
        %p324 = pneg %p107
        %s325 = smul.u32 2, %s28
        %p326 = scmp.lt.s32.totalorder %s27, 1
        %s327 = scalar_select %p326, %s27, 1
        %p328 = scmp.lt.s32.totalorder %s325, 1
        %s329 = scalar_select %p328, %s325, 1
        %s330 = smul.addr %s327, 2
        %s331 = sadd.s32 %s329, %s330
        %s332 = smul.addr %s331, 4
        %s333 = scalar_lea.vmem %s3, %s332
        %p334 = pneg %p138
        %p335 = pneg %p135
        %p336 = pneg %p159
        %p337 = pneg %p156
        %p338 = pneg %p180
        %p339 = pneg %p177
        %p340 = pneg %p206
        %p341 = pneg %p203
        %s342 = sand.u32 %s193, 1
        %s343 = scalar_lea.sflag [#allocation5], %s342
        %s344 = sand.u32 %s193, 1
        %s345 = smul.addr %s344, 2
        %s346 = scalar_lea.vmem [#allocation4], %s345
        %p347 = pneg %p232
        %p348 = pneg %p229
        %p349 = scmp.lt.s32.totalorder %s27, 1
        %s350 = scalar_select %p349, %s27, 1
        %s351 = smul.addr %s350, 4
        %s352 = scalar_lea.vmem %s7, %s351
        %p353 = scmp.lt.s32.totalorder %s27, 1
        %s354 = scalar_select %p353, %s27, 1
        %s355 = scalar_lea.vmem %s0, %s354
        %s356 = smul.u32 32, %s28
        %p357 = scmp.lt.s32.totalorder %s27, 1
        %s358 = scalar_select %p357, %s27, 1
        %p359 = scmp.lt.s32.totalorder %s356, 31
        %s360 = scalar_select %p359, %s356, 31
        %s361 = smul.addr %s358, 32
        %s362 = sadd.s32 %s360, %s361
        %s363 = smul.addr %s362, 8
        %s364 = scalar_lea.vmem %s1, %s363
        %s365 = smul.u32 32, %s28
        %p366 = scmp.lt.s32.totalorder %s27, 1
        %s367 = scalar_select %p366, %s27, 1
        %s368 = smul.addr %s367, 2
        %s369 = scalar_lea.vmem %s2, %s368
        %s370 = smul.u32 2, %s28
        %p371 = scmp.lt.s32.totalorder %s27, 1
        %s372 = scalar_select %p371, %s27, 1
        %p373 = scmp.lt.s32.totalorder %s370, 1
        %s374 = scalar_select %p373, %s370, 1
        %s375 = smul.addr %s372, 2
        %s376 = sadd.s32 %s374, %s375
        %s377 = smul.addr %s376, 4
        %s378 = scalar_lea.vmem %s3, %s377
        %s379 = smul.u32 2, %s28
        %p380 = scmp.lt.s32.totalorder %s27, 1
        %s381 = scalar_select %p380, %s27, 1
        %s382 = smul.addr %s381, 4
        %s383 = scalar_lea.vmem %s7, %s382
        %p384 = scmp.eq.s32.totalorder %s28, 0
        // Predicated region
        $region45: #{tpu_custom_call.1} parent=43 // pred_check
          %p385 = pneg %p384
        $region46: #{tpu_custom_call.1} parent=43 // pred_check_branch
          %387 = sbr.rel (%p385) target = $region48
        $region47: #{tpu_custom_call.1} parent=43 // pred_region
          %vm388 = vcmask 0
          %389 = vst.msk [vmem:[#allocation2] sm:$0x1] %vm388, -inf
          %vm390 = vcmask 3072
          %391 = vst.msk [vmem:[%s383] sm:$0xf] %vm390, 0.0
        $region48: #{tpu_custom_call.1} parent=43 // pred_fallthru
          _
        %v392 = vld [vmem:[%s364] sm:$0xff]
        %v393 = vld [vmem:[%s364 + $0x8] sm:$0xff]
        %v394 = vld [vmem:[%s364 + $0x10] sm:$0xff]
        %v395 = vld [vmem:[%s364 + $0x18] sm:$0xff]
        %v396 = vld [vmem:[%s364 + $0x20] sm:$0xff]
        %v397 = vld [vmem:[%s364 + $0x28] sm:$0xff]
        %v398 = vld [vmem:[%s364 + $0x30] sm:$0xff]
        %v399 = vld [vmem:[%s364 + $0x38] sm:$0xff]
        %v400 = vld [vmem:[%s364 + $0x40] sm:$0xff]
        %v401 = vld [vmem:[%s364 + $0x48] sm:$0xff]
        %v402 = vld [vmem:[%s364 + $0x50] sm:$0xff]
        %v403 = vld [vmem:[%s364 + $0x58] sm:$0xff]
        %v404 = vld [vmem:[%s364 + $0x60] sm:$0xff]
        %v405 = vld [vmem:[%s364 + $0x68] sm:$0xff]
        %v406 = vld [vmem:[%s364 + $0x70] sm:$0xff]
        %v407 = vld [vmem:[%s364 + $0x78] sm:$0xff]
        %v408 = vld [vmem:[%s364 + $0x80] sm:$0xff]
        %v409 = vld [vmem:[%s364 + $0x88] sm:$0xff]
        %v410 = vld [vmem:[%s364 + $0x90] sm:$0xff]
        %v411 = vld [vmem:[%s364 + $0x98] sm:$0xff]
        %v412 = vld [vmem:[%s364 + $0xa0] sm:$0xff]
        %v413 = vld [vmem:[%s364 + $0xa8] sm:$0xff]
        %v414 = vld [vmem:[%s364 + $0xb0] sm:$0xff]
        %v415 = vld [vmem:[%s364 + $0xb8] sm:$0xff]
        %v416 = vld [vmem:[%s364 + $0xc0] sm:$0xff]
        %v417 = vld [vmem:[%s364 + $0xc8] sm:$0xff]
        %v418 = vld [vmem:[%s364 + $0xd0] sm:$0xff]
        %v419 = vld [vmem:[%s364 + $0xd8] sm:$0xff]
        %v420 = vld [vmem:[%s364 + $0xe0] sm:$0xff]
        %v421 = vld [vmem:[%s364 + $0xe8] sm:$0xff]
        %v422 = vld [vmem:[%s364 + $0xf0] sm:$0xff]
        %v423 = vld [vmem:[%s364 + $0xf8] sm:$0xff]
        %v424 = vld [vmem:[%s355] sm:$0x1]
        %v426 = vlaneseq
        %v427 = vshrl.u32 %v426, 7
        %v428 = vsub.s32 0, %v427
        %v429 = vrot.slane %v424, %v428
        %v431 = vadd.f32 %v392, %v429
        %v432 = vadd.f32 %v393, %v429
        %v433 = vadd.f32 %v394, %v429
        %v434 = vadd.f32 %v395, %v429
        %v435 = vadd.f32 %v396, %v429
        %v436 = vadd.f32 %v397, %v429
        %v437 = vadd.f32 %v398, %v429
        %v438 = vadd.f32 %v399, %v429
        %v439 = vadd.f32 %v400, %v429
        %v440 = vadd.f32 %v401, %v429
        %v441 = vadd.f32 %v402, %v429
        %v442 = vadd.f32 %v403, %v429
        %v443 = vadd.f32 %v404, %v429
        %v444 = vadd.f32 %v405, %v429
        %v445 = vadd.f32 %v406, %v429
        %v446 = vadd.f32 %v407, %v429
        %v447 = vadd.f32 %v408, %v429
        %v448 = vadd.f32 %v409, %v429
        %v449 = vadd.f32 %v410, %v429
        %v450 = vadd.f32 %v411, %v429
        %v451 = vadd.f32 %v412, %v429
        %v452 = vadd.f32 %v413, %v429
        %v453 = vadd.f32 %v414, %v429
        %v454 = vadd.f32 %v415, %v429
        %v455 = vadd.f32 %v416, %v429
        %v456 = vadd.f32 %v417, %v429
        %v457 = vadd.f32 %v418, %v429
        %v458 = vadd.f32 %v419, %v429
        %v459 = vadd.f32 %v420, %v429
        %v460 = vadd.f32 %v421, %v429
        %v461 = vadd.f32 %v422, %v429
        %v462 = vadd.f32 %v423, %v429
        %v463 = vtanh.pop %v431
        %v464 = vtanh.pop %v432
        %v465 = vtanh.pop %v433
        %v466 = vtanh.pop %v434
        %v467 = vtanh.pop %v435
        %v468 = vtanh.pop %v436
        %v469 = vtanh.pop %v437
        %v470 = vtanh.pop %v438
        %v471 = vtanh.pop %v439
        %v472 = vtanh.pop %v440
        %v473 = vtanh.pop %v441
        %v474 = vtanh.pop %v442
        %v475 = vtanh.pop %v443
        %v476 = vtanh.pop %v444
        %v477 = vtanh.pop %v445
        %v478 = vtanh.pop %v446
        %v479 = vtanh.pop %v447
        %v480 = vtanh.pop %v448
        %v481 = vtanh.pop %v449
        %v482 = vtanh.pop %v450
        %v483 = vtanh.pop %v451
        %v484 = vtanh.pop %v452
        %v485 = vtanh.pop %v453
        %v486 = vtanh.pop %v454
        %v487 = vtanh.pop %v455
        %v488 = vtanh.pop %v456
        %v489 = vtanh.pop %v457
        %v490 = vtanh.pop %v458
        %v491 = vtanh.pop %v459
        %v492 = vtanh.pop %v460
        %v493 = vtanh.pop %v461
        %v494 = vtanh.pop %v462
        %v495 = vld [vmem:[%s4] sm:$0x1]
        %s496 = sld [smem:[#allocation3]]
        %v497 = vstv %s496
        %vm498 = vcmask 261120
        %v500 = vsel %vm498, %v495, 0
        %v503 = vsel %vm498, %v463, 0
        %v506 = vsel %vm498, %v464, 0
        %v509 = vsel %vm498, %v465, 0
        %v512 = vsel %vm498, %v466, 0
        %v515 = vsel %vm498, %v467, 0
        %v518 = vsel %vm498, %v468, 0
        %v521 = vsel %vm498, %v469, 0
        %v524 = vsel %vm498, %v470, 0
        %v527 = vsel %vm498, %v471, 0
        %v530 = vsel %vm498, %v472, 0
        %v533 = vsel %vm498, %v473, 0
        %v536 = vsel %vm498, %v474, 0
        %v539 = vsel %vm498, %v475, 0
        %v542 = vsel %vm498, %v476, 0
        %v545 = vsel %vm498, %v477, 0
        %v548 = vsel %vm498, %v478, 0
        %v551 = vsel %vm498, %v479, 0
        %v554 = vsel %vm498, %v480, 0
        %v557 = vsel %vm498, %v481, 0
        %v560 = vsel %vm498, %v482, 0
        %v563 = vsel %vm498, %v483, 0
        %v566 = vsel %vm498, %v484, 0
        %v569 = vsel %vm498, %v485, 0
        %v572 = vsel %vm498, %v486, 0
        %v575 = vsel %vm498, %v487, 0
        %v578 = vsel %vm498, %v488, 0
        %v581 = vsel %vm498, %v489, 0
        %v584 = vsel %vm498, %v490, 0
        %v587 = vsel %vm498, %v491, 0
        %v590 = vsel %vm498, %v492, 0
        %v593 = vsel %vm498, %v493, 0
        %v596 = vsel %vm498, %v494, 0
        %598 = vmatprep.subr.mxu0 0.0
        %599 = vmatpush1.xpose.msra.mxu0 %v548
        %600 = vmatprep.subr.mxu0 0.0
        %601 = vmatpush1.xpose.msra.mxu0 %v545
        %602 = vmatprep.subr.mxu0 0.0
        %603 = vmatpush1.xpose.msra.mxu0 %v542
        %604 = vmatprep.subr.mxu0 0.0
        %605 = vmatpush1.xpose.msra.mxu0 %v539
        %606 = vmatprep.subr.mxu0 0.0
        %607 = vmatpush1.xpose.msra.mxu0 %v536
        %608 = vmatprep.subr.mxu0 0.0
        %609 = vmatpush1.xpose.msra.mxu0 %v533
        %610 = vmatprep.subr.mxu0 0.0
        %611 = vmatpush1.xpose.msra.mxu0 %v530
        %612 = vmatprep.subr.mxu0 0.0
        %613 = vmatpush1.xpose.msra.mxu0 %v527
        %614 = vmatprep.subr.mxu0 0.0
        %615 = vmatpush1.xpose.msra.mxu0 %v524
        %616 = vmatprep.subr.mxu0 0.0
        %617 = vmatpush1.xpose.msra.mxu0 %v521
        %618 = vmatprep.subr.mxu0 0.0
        %619 = vmatpush1.xpose.msra.mxu0 %v518
        %620 = vmatprep.subr.mxu0 0.0
        %621 = vmatpush1.xpose.msra.mxu0 %v515
        %622 = vmatprep.subr.mxu0 0.0
        %623 = vmatpush1.xpose.msra.mxu0 %v512
        %624 = vmatprep.subr.mxu0 0.0
        %625 = vmatpush1.xpose.msra.mxu0 %v509
        %626 = vmatprep.subr.mxu0 0.0
        %627 = vmatpush1.xpose.msra.mxu0 %v506
        %628 = vmatprep.subr.mxu0 0.0
        %629 = vmatpush1.xpose.msra.mxu0 %v503
        %630 = vmatprep.subr.mxu0 0.0
        %631 = vmatpush2.xpose.msra.mxu0 %v596
        %632 = vmatprep.subr.mxu0 0.0
        %633 = vmatpush2.xpose.msra.mxu0 %v593
        %634 = vmatprep.subr.mxu0 0.0
        %635 = vmatpush2.xpose.msra.mxu0 %v590
        %636 = vmatprep.subr.mxu0 0.0
        %637 = vmatpush2.xpose.msra.mxu0 %v587
        %638 = vmatprep.subr.mxu0 0.0
        %639 = vmatpush2.xpose.msra.mxu0 %v584
        %640 = vmatprep.subr.mxu0 0.0
        %641 = vmatpush2.xpose.msra.mxu0 %v581
        %642 = vmatprep.subr.mxu0 0.0
        %643 = vmatpush2.xpose.msra.mxu0 %v578
        %644 = vmatprep.subr.mxu0 0.0
        %645 = vmatpush2.xpose.msra.mxu0 %v575
        %646 = vmatprep.subr.mxu0 0.0
        %647 = vmatpush2.xpose.msra.mxu0 %v572
        %648 = vmatprep.subr.mxu0 0.0
        %649 = vmatpush2.xpose.msra.mxu0 %v569
        %650 = vmatprep.subr.mxu0 0.0
        %651 = vmatpush2.xpose.msra.mxu0 %v566
        %652 = vmatprep.subr.mxu0 0.0
        %653 = vmatpush2.xpose.msra.mxu0 %v563
        %654 = vmatprep.subr.mxu0 0.0
        %655 = vmatpush2.xpose.msra.mxu0 %v560
        %656 = vmatprep.subr.mxu0 0.0
        %657 = vmatpush2.xpose.msra.mxu0 %v557
        %658 = vmatprep.subr.mxu0 0.0
        %659 = vmatpush2.xpose.msra.mxu0 %v554
        %660 = vmatprep.subr.mxu0 0.0
        %661 = vmatpush2.xpose.msra.mxu0 %v551
        %662 = vmatprep.mubr.f32.mxu0 0.0
        %663 = vmatmul.mubr.f32.gmra.mxu0 %v500
        %v664 = vpop.f32.mrf.mxu0
        %v665 = vadd.f32 %v497, %v664
        %v666 = vpop.f32.mrf.mxu0
        %v667 = vadd.f32 %v497, %v666
        %668 = vdwg.mxu0
        %v671 = vcombine.low %v665, %v667
        %v673 = vunpack.c.l.s4 1966171168
        %v674 = vunpack.c.0.s8 %v673
        %v675 = vlaneseq
        %v676 = vshrl.u32 %v675, 7
        %v677 = vsub.s32 %v674, %v676
        %v678 = vrot.slane %v671, %v677
        %v680 = vunpack.c.l.s4 1966171168
        %v681 = vunpack.c.0.s8 %v680
        %v682 = vlaneseq
        %v683 = vshrl.u32 %v682, 7
        %v684 = vsub.s32 %v681, %v683
        %v685 = vrot.slane %v678, %v684
        %s687 = smul.u32 %s28, 2
        %s688 = scalar_lea.vmem %s346, %s687 [#allocation4]
        %v689 = vlaneseq
        %vm690 = vcmp.ge.s32.totalorder %v689, 0
        %vm691 = vcmp.lt.s32.totalorder %v689, 256
        %vm692 = vmand %vm690, %vm691
        %693 = vst.msk [vmem:[%s688] sm:$0x3] %vm692, %v685
        %s694 = scalar_lea.vmem %s369, %s687
        %v695 = vld [vmem:[%s694] sm:$0x3]
        %v696 = vld [vmem:[#allocation2] sm:$0x1]
        %vm697 = vcmask 1040384
        %v698 = vsel %vm697, %v665, -inf
        %v699 = vsel %vm697, %v667, -inf
        %v700 = vmax.f32 %v698, %v699
        %701 = vmax.xlane.f32.xlu0 %v700
        %v702 = vpop.xlane.xlu0 %701
        %v703 = vmax.f32 %v696, %v702
        %v704 = vsub.f32 %v696, %v703
        %v705 = vmul.f32 %v704, 1.442695
        %v706 = vpow.pop %v705
        %708 = vset.pattern.permute.xlu0 0
        %709 = vperm.xlu0 %708, %v703
        %v710 = vpop.permute.xlu0 %709
        %v712 = vlaneseq
        %v713 = vshrl.u32 %v712, 7
        %v714 = vsub.s32 0, %v713
        %v715 = vrot.slane %v710, %v714
        %v716 = vsub.f32 %v665, %v715
        %v717 = vsub.f32 %v667, %v715
        %v718 = vmul.f32 %v716, 1.442695
        %v719 = vpow.pop %v718
        %v720 = vmul.f32 %v717, 1.442695
        %v721 = vpow.pop %v720
        %v723 = vlaneseq
        %v724 = vshrl.u32 %v723, 7
        %v725 = vsub.s32 0, %v724
        %v726 = vrot.slane %v695, %v725
        %v727 = vlaneseq
        %v728 = vshrl.u32 %v727, 7
        %v729 = vsub.s32 1, %v728
        %v730 = vrot.slane %v695, %v729
        %v733 = vmul.f32 %v719, %v726
        %v734 = vmul.f32 %v721, %v730
        %v735 = vld [vmem:[%s378] sm:$0xff]
        %v736 = vlaneseq
        %v737 = vshrl.u32 %v736, 7
        %v738 = vsub.s32 0, %v737
        %v739 = vrot.slane %v733, %v738
        %v740 = vlaneseq
        %v741 = vshrl.u32 %v740, 7
        %v742 = vsub.s32 0, %v741
        %v743 = vrot.slane %v734, %v742
        %v745 = vcombine.high %v735, %v735
        %v747 = vmul.f32 %v739, %v735
        %v748 = vmul.f32 %v743, %v745
        %vm749 = vcmask 1043456
        %v750 = vsel %vm749, %v747, 0.0
        %v751 = vsel %vm749, %v748, 0.0
        %v752 = vadd.f32 %v750, %v751
        %753 = vadd.xlane.f32.xlu0 %v752
        %v754 = vpop.xlane.xlu0 %753
        %v755 = vld [vmem:[%s383] sm:$0xf]
        %v757 = vlaneseq
        %v758 = vshrl.u32 %v757, 7
        %v759 = vsub.s32 0, %v758
        %v760 = vrot.slane %v706, %v759
        %v762 = vmul.f32 %v760, %v755
        %v763 = vadd.f32 %v762, %v754
        %vm764 = vcmask 3072
        %765 = vst.msk [vmem:[%s383] sm:$0xf] %vm764, %v763
        %vm766 = vcmask 0
        %767 = vst.msk [vmem:[#allocation2] sm:$0x1] %vm766, %v703
        // Predicated region
        $region49: #{tpu_custom_call.1} parent=43 // pred_check
          %p768 = pneg %p384
        $region50: #{tpu_custom_call.1} parent=43 // pred_check_branch
          %770 = sbr.rel (%p768) target = $region52
        $region51: #{tpu_custom_call.1} parent=43 // pred_region
          %v771 = vld [vmem:[#allocation2] sm:$0x1]
          %v772 = vld [vmem:[%s346] sm:$0x3]
          %774 = vset.pattern.permute.xlu0 0
          %775 = vperm.xlu0 %774, %v771
          %v776 = vpop.permute.xlu0 %775
          %v778 = vlaneseq
          %v779 = vshrl.u32 %v778, 7
          %v780 = vsub.s32 0, %v779
          %v781 = vrot.slane %v776, %v780
          %v782 = vsub.f32 %v772, %v781
          %v783 = vmul.f32 %v782, 1.442695
          %v784 = vpow.pop %v783
          %v785 = vld [vmem:[%s369] sm:$0x3]
          %v786 = vmul.f32 %v784, %v785
          %v788 = vlaneseq
          %v789 = vshrl.u32 %v788, 7
          %v790 = vsub.s32 0, %v789
          %v791 = vrot.slane %v786, %v790
          %v792 = vlaneseq
          %v793 = vshrl.u32 %v792, 7
          %v794 = vsub.s32 1, %v793
          %v795 = vrot.slane %v786, %v794
          %v798 = vsel %vm697, %v791, 0.0
          %v799 = vsel %vm697, %v795, 0.0
          %v800 = vadd.f32 %v798, %v799
          %801 = vadd.xlane.f32.xlu0 %v800
          %v802 = vpop.xlane.xlu0 %801
          %v803 = vadd.f32 %v802, 0.0
          %v804 = vadd.f32 %v803, 1e-10
          %v805 = vrcp.pop %v804
          %v807 = vlaneseq
          %v808 = vshrl.u32 %v807, 7
          %v809 = vsub.s32 0, %v808
          %v810 = vrot.slane %v805, %v809
          %v812 = vmul.f32 %v786, %v810
          %813 = vst.msk [vmem:[%s346] sm:$0x3] %vm692, %v812
          %v814 = vld [vmem:[%s383] sm:$0xf]
          %v815 = vlaneseq
          %v816 = vshrl.u32 %v815, 7
          %v817 = vsub.s32 0, %v816
          %v818 = vrot.slane %v805, %v817
          %v819 = vmul.f32 %v814, %v818
          %820 = vst.msk [vmem:[%s383] sm:$0xf] %vm764, %v819
        $region52: #{tpu_custom_call.1} parent=43 // pred_fallthru
          _
        %s821 = sand.u32 %s193, 1
        %s822 = scalar_lea.sflag [#allocation5], %s821
        %s823 = sand.u32 %s193, 1
        %s824 = smul.addr %s823, 2
        %s825 = scalar_lea.vmem [#allocation4], %s824
        %p826 = scmp.lt.s32.totalorder %s27, 1
        %s827 = scalar_select %p826, %s27, 1
        %s828 = smul.addr %s827, 4
        %s829 = scalar_lea.vmem %s7, %s828
        // Predicated region
        $region53: #{tpu_custom_call.1} parent=43 // pred_check
          %p830 = pneg %p203
        $region54: #{tpu_custom_call.1} parent=43 // pred_check_branch
          %832 = sbr.rel (%p830) target = $region56
        $region55: #{tpu_custom_call.1} parent=43 // pred_region
          %s834 = ssub.s32 32, 32
          %835 = vsyncadd %s822, %s834
          %s836 = smul.addr %s27, 2
          %s837 = smul.addr %s836, 16
          %s838 = scalar_lea.hbm %s6, %s837
          %s840 = sshll.u32 %s825, 4
          %s841 = int_to_ptr.vmem [resolvable:$true] %s840
          %843 = dma.vmem_to_hbm [thread:$0]  %s841, 32, %s838, %s822
        $region56: #{tpu_custom_call.1} parent=43 // pred_fallthru
          _
        // Predicated region
        $region57: #{tpu_custom_call.1} parent=43 // pred_check
          %p844 = pneg %p229
        $region58: #{tpu_custom_call.1} parent=43 // pred_check_branch
          %846 = sbr.rel (%p844) target = $region60
        $region59: #{tpu_custom_call.1} parent=43 // pred_region
          _
        $region60: #{tpu_custom_call.1} parent=43 // pred_fallthru
          _
      $region44: #{tpu_custom_call.1} parent=5 // pred_fallthru
        _
      %p847 = scmp.le.s32.totalorder 2, %s18
      // Predicated region
      $region61: #{tpu_custom_call.1} parent=5 // pred_check
        %p848 = pneg %p847
      $region62: #{tpu_custom_call.1} parent=5 // pred_check_branch
        %850 = sbr.rel (%p848) target = $region64
      $region63: #{tpu_custom_call.1} parent=5 // pred_region
        %s851 = ssub.s32 %s18, 2
        // Predicated region
        $region65: #{tpu_custom_call.1} parent=63 // pred_check
          %p852 = pneg %p209
        $region66: #{tpu_custom_call.1} parent=63 // pred_check_branch
          %854 = sbr.rel (%p852) target = $region68
        $region67: #{tpu_custom_call.1} parent=63 // pred_region
          %s855 = sand.u32 %s194, 1
          %s856 = scalar_lea.sflag [#allocation5], %s855
          %s857 = sand.u32 %s194, 1
          %s858 = smul.addr %s857, 2
          %s859 = scalar_lea.vmem [#allocation4], %s858
          %860 = dma.done %s856, 32
        $region68: #{tpu_custom_call.1} parent=63 // pred_fallthru
          _
        // Predicated region
        $region69: #{tpu_custom_call.1} parent=63 // pred_check
          %p861 = pneg %p235
        $region70: #{tpu_custom_call.1} parent=63 // pred_check_branch
          %863 = sbr.rel (%p861) target = $region72
        $region71: #{tpu_custom_call.1} parent=63 // pred_region
          %p864 = scmp.lt.s32.totalorder %s29, 1
          %s865 = scalar_select %p864, %s29, 1
          %s866 = smul.addr %s865, 4
          %s867 = scalar_lea.vmem %s7, %s866
        $region72: #{tpu_custom_call.1} parent=63 // pred_fallthru
          _
      $region64: #{tpu_custom_call.1} parent=5 // pred_fallthru
        _
    $region6: #{tpu_custom_call.1} parent=1 // loop_footer
      %s22 = sadd.s32 1, %s18
    $region7: #{tpu_custom_call.1} parent=1 // loop_footer_branch
      %17 = sbr.rel target = $region3
    $region8: #{tpu_custom_call.1} parent=1 // loop_exit
      _
    %868 = vsyncpa [#allocation5], 1
    %s869 = scalar_lea.sflag [#allocation5], 1
    %870 = vsyncpa %s869, 1

</llo_original>
